<compile_context>
chip_gen: v7x
topology: tpu7x:2x2x1
jax: 0.10.0
libtpu: 0.0.40
codegen_flags: <defaults>
</compile_context>

<pallas_src>
import functools

import jax
import jax.numpy as jnp
from jax.experimental import pallas as pl
from jax.experimental.pallas import tpu as pltpu

MARGIN = 1.0
PAIRWISE_EPS = 1e-6  # torch F.pairwise_distance default eps
_LANES = 128


def _round_up(x, m):
    return (x + m - 1) // m * m


def _pick_block_b(batch, feat, itemsize, budget_bytes=20 * 1024 * 1024, max_tb=1024):
    """Largest multiple-of-8 batch tile s.t. 2 inputs x 2 pipeline buffers fit the budget."""
    rows = budget_bytes // max(1, 4 * feat * itemsize)  # 2 inputs * 2 buffers
    tb = min(_round_up(batch, 8), max_tb, max(8, (rows // 8) * 8))
    return max(8, tb)


def _contrastive_loss_kernel(o1_ref, o2_ref, lbl_ref, out_ref, *, margin, batch, block_b):
    i = pl.program_id(0)

    # Narrow dtypes (e.g. bf16) are upcast here, after the (cheaper) narrow DMA.
    o1 = o1_ref[...].astype(jnp.float32)                     # (TB, D)
    o2 = o2_ref[...].astype(jnp.float32)                     # (TB, D)
    diff = o1 - o2 + PAIRWISE_EPS                            # torch pairwise_distance eps semantics

    dist_sq = jnp.sum(diff * diff, axis=-1, keepdims=True)   # (TB, 1)  XLU cross-lane reduce
    dist = jnp.sqrt(dist_sq)                                 # (TB, 1)

    label = lbl_ref[...].astype(jnp.float32)                 # (TB, 1)
    hinge = jnp.maximum(margin - dist, 0.0)                  # clamp(margin - d, 0)
    per_pair = (1.0 - label) * dist_sq + label * (hinge * hinge)

    # Mask rows past the true batch size (last tile may be padded).
    row = i * block_b + jax.lax.broadcasted_iota(jnp.int32, (block_b, 1), 0)
    per_pair = jnp.where(row < batch, per_pair, 0.0)

    partial = jnp.sum(per_pair)                              # per-tile partial sum
    # Lane-dense (1, 128) store; wrapper reads column 0 of each row.
    out_ref[...] = jnp.full((1, _LANES), partial, dtype=jnp.float32)


def contrastive_loss(output1, output2, label, margin=MARGIN):
    """output1, output2: [B, D] (f32/bf16); label: [B] (0/1). Returns scalar f32 loss."""
    B, D = output1.shape
    assert output2.shape == (B, D)
    label2d = jnp.reshape(label, (B, 1)).astype(jnp.float32)

    itemsize = jnp.dtype(output1.dtype).itemsize
    tb = _pick_block_b(B, D, itemsize)
    num_tiles = pl.cdiv(B, tb)

    kernel = functools.partial(
        _contrastive_loss_kernel, margin=float(margin), batch=B, block_b=tb
    )

    cost = pl.CostEstimate(
        flops=5 * B * D,
        transcendentals=B,  # sqrt per row
        bytes_accessed=2 * B * D * itemsize + B * 4 + num_tiles * _LANES * 4,
    )

    partials = pl.pallas_call(
        kernel,
        out_shape=jax.ShapeDtypeStruct((num_tiles, _LANES), jnp.float32),
        grid=(num_tiles,),
        in_specs=[
            pl.BlockSpec((tb, D), lambda i: (i, 0)),
            pl.BlockSpec((tb, D), lambda i: (i, 0)),
            pl.BlockSpec((tb, 1), lambda i: (i, 0)),
        ],
        out_specs=pl.BlockSpec((1, _LANES), lambda i: (i, 0)),
        compiler_params=pltpu.CompilerParams(
            dimension_semantics=("parallel",),
            vmem_limit_bytes=32 * 1024 * 1024,
        ),
        cost_estimate=cost,
    )(output1, output2, label2d)

    # Final tiny mean in the wrapper; divide by true B exactly once.
    return jnp.sum(partials[:, 0]) / B


def _reference(output1, output2, label, margin=MARGIN):
    o1 = output1.astype(jnp.float32)
    o2 = output2.astype(jnp.float32)
    diff = o1 - o2 + PAIRWISE_EPS
    d = jnp.sqrt(jnp.sum(diff * diff, axis=-1))
    lbl = label.astype(jnp.float32)
    return jnp.mean((1.0 - lbl) * d**2 + lbl * jnp.maximum(margin - d, 0.0) ** 2)


if __name__ == "__main__":
    key = jax.random.PRNGKey(0)
    k1, k2, k3, k4, k5, k6 = jax.random.split(key, 6)

    # Case 1: small f32 (matches the module's toy usage).
    B, D = 8, 32
    output1 = jax.random.normal(k1, (B, D), dtype=jnp.float32)
    output2 = jax.random.normal(k2, (B, D), dtype=jnp.float32)
    label = jax.random.bernoulli(k3, 0.5, (B,)).astype(jnp.float32)

    loss = contrastive_loss(output1, output2, label)
    jax.block_until_ready(loss)
    ref = _reference(output1, output2, label)
    assert jnp.allclose(loss, ref, rtol=1e-5, atol=1e-5), (loss, ref)

    # Case 2: bf16 inputs with B not a multiple of the tile (exercises narrow-load
    # path and the padded-row mask).
    B2, D2 = 20, 32
    o1b = jax.random.normal(k4, (B2, D2), dtype=jnp.float32).astype(jnp.bfloat16)
    o2b = jax.random.normal(k5, (B2, D2), dtype=jnp.float32).astype(jnp.bfloat16)
    lblb = jax.random.bernoulli(k6, 0.5, (B2,)).astype(jnp.float32)

    loss2 = contrastive_loss(o1b, o2b, lblb)
    jax.block_until_ready(loss2)
    ref2 = _reference(o1b, o2b, lblb)
    assert jnp.allclose(loss2, ref2, rtol=1e-5, atol=1e-5), (loss2, ref2)

    print("KERNEL_OK")
</pallas_src>

<mosaic_0001>
module attributes {stable_mosaic.version = 11 : i64} {
  func.func @_contrastive_loss_kernel(%arg0: i32, %arg1: memref<8x32xf32, #tpu.memory_space<vmem>>, %arg2: memref<8x32xf32, #tpu.memory_space<vmem>>, %arg3: memref<8x1xf32, #tpu.memory_space<vmem>>, %arg4: memref<1x128xf32, #tpu.memory_space<vmem>>) attributes {dimension_semantics = [#tpu.dimension_semantics<parallel>], iteration_bounds = array<i64: 1>, scalar_prefetch = 0 : i64, scratch_operands = 0 : i64, tpu.core_type = #tpu.core_type<tc>, window_params = [{transform_indices = @transform_0, window_bounds = array<i64: 8, 32>}, {transform_indices = @transform_1, window_bounds = array<i64: 8, 32>}, {transform_indices = @transform_2, window_bounds = array<i64: 8, 1>}, {transform_indices = @transform_3, window_bounds = array<i64: 1, 128>}]} {
    %c0 = arith.constant 0 : index
    %c0_0 = arith.constant 0 : index
    %0 = vector.load %arg1[%c0, %c0_0] : memref<8x32xf32, #tpu.memory_space<vmem>>, vector<8x32xf32>
    %c0_1 = arith.constant 0 : index
    %c0_2 = arith.constant 0 : index
    %1 = vector.load %arg2[%c0_1, %c0_2] : memref<8x32xf32, #tpu.memory_space<vmem>>, vector<8x32xf32>
    %2 = arith.subf %0, %1 : vector<8x32xf32>
    %cst = arith.constant 9.99999997E-7 : f32
    %3 = vector.broadcast %cst : f32 to vector<8x32xf32>
    %4 = arith.addf %2, %3 : vector<8x32xf32>
    %5 = arith.mulf %4, %4 : vector<8x32xf32>
    %cst_3 = arith.constant dense<0.000000e+00> : vector<8xf32>
    %6 = vector.multi_reduction <add>, %5, %cst_3 [1] : vector<8x32xf32> to vector<8xf32>
    %7 = vector.shape_cast %6 : vector<8xf32> to vector<8x1xf32>
    %8 = math.sqrt %7 : vector<8x1xf32>
    %c0_4 = arith.constant 0 : index
    %c0_5 = arith.constant 0 : index
    %9 = vector.load %arg3[%c0_4, %c0_5] : memref<8x1xf32, #tpu.memory_space<vmem>>, vector<8x1xf32>
    %cst_6 = arith.constant 1.000000e+00 : f32
    %10 = vector.broadcast %cst_6 : f32 to vector<8x1xf32>
    %11 = arith.subf %10, %8 : vector<8x1xf32>
    %cst_7 = arith.constant 0.000000e+00 : f32
    %12 = vector.broadcast %cst_7 : f32 to vector<8x1xf32>
    %13 = arith.maximumf %11, %12 : vector<8x1xf32>
    %cst_8 = arith.constant 1.000000e+00 : f32
    %14 = vector.broadcast %cst_8 : f32 to vector<8x1xf32>
    %15 = arith.subf %14, %9 : vector<8x1xf32>
    %16 = arith.mulf %15, %7 : vector<8x1xf32>
    %17 = arith.mulf %13, %13 : vector<8x1xf32>
    %18 = arith.mulf %9, %17 : vector<8x1xf32>
    %19 = arith.addf %16, %18 : vector<8x1xf32>
    %c8_i32 = arith.constant 8 : i32
    %20 = arith.muli %arg0, %c8_i32 : i32
    %21 = tpu.iota {dimensions = array<i32: 0>} : vector<8x1xi32>
    %22 = vector.broadcast %20 : i32 to vector<8x1xi32>
    %23 = arith.addi %22, %21 : vector<8x1xi32>
    %c8_i32_9 = arith.constant 8 : i32
    %24 = vector.broadcast %c8_i32_9 : i32 to vector<8x1xi32>
    %25 = arith.cmpi slt, %23, %24 : vector<8x1xi32>
    %cst_10 = arith.constant 0.000000e+00 : f32
    %26 = vector.broadcast %cst_10 : f32 to vector<8x1xf32>
    %27 = arith.select %25, %19, %26 : vector<8x1xi1>, vector<8x1xf32>
    %28 = vector.shape_cast %27 : vector<8x1xf32> to vector<1x8x1xf32>
    %cst_11 = arith.constant dense<0.000000e+00> : vector<1xf32>
    %29 = vector.multi_reduction <add>, %28, %cst_11 [1, 2] : vector<1x8x1xf32> to vector<1xf32>
    %30 = vector.shape_cast %29 : vector<1xf32> to vector<1x1x1xf32>
    %31 = vector.extract %30[0, 0, 0] : f32 from vector<1x1x1xf32>
    %32 = vector.broadcast %31 : f32 to vector<1x128xf32>
    %c0_12 = arith.constant 0 : index
    %c0_13 = arith.constant 0 : index
    %33 = vector.load %arg4[%c0_12, %c0_13] : memref<1x128xf32, #tpu.memory_space<vmem>>, vector<1x128xf32>
    tpu.vector_store %arg4[%c0_12, %c0_13], %32 {strides = array<i32>} : memref<1x128xf32, #tpu.memory_space<vmem>>, vector<1x128xf32>,
    return
  }
  func.func @transform_0(%arg0: i32) -> (i32, i32) {
    %c0_i32 = arith.constant 0 : i32
    %c0_i32_0 = arith.constant 0 : i32
    return %arg0, %c0_i32 : i32, i32
  }
  func.func @transform_1(%arg0: i32) -> (i32, i32) {
    %c0_i32 = arith.constant 0 : i32
    %c0_i32_0 = arith.constant 0 : i32
    return %arg0, %c0_i32 : i32, i32
  }
  func.func @transform_2(%arg0: i32) -> (i32, i32) {
    %c0_i32 = arith.constant 0 : i32
    %c0_i32_0 = arith.constant 0 : i32
    return %arg0, %c0_i32 : i32, i32
  }
  func.func @transform_3(%arg0: i32) -> (i32, i32) {
    %c0_i32 = arith.constant 0 : i32
    %c0_i32_0 = arith.constant 0 : i32
    return %arg0, %c0_i32 : i32, i32
  }
}

</mosaic_0001>

<llo_original>
// kernel: tpu_custom_call.1
$region0: #{tpu_custom_call.1}
  #allocation0 [shape = 'u32[]', space=smem, size = 0x4, offset = 0x4, fixed_abs, tag = 'smem constant byte address 0x4 - core index']
  #allocation1 [shape = 'u32[144,128]{1,0:T(1,128)}', space=vmem, size = 0x12000, scoped, tag = 'internal scratch']
  %s0 = inlined_call_operand.vmem [shape: f32[8,32], index: 0, kind: input, shape index: {}]
  %s1 = inlined_call_operand.hbm [shape: f32[8,32], index: 1, kind: input, shape index: {}]
  %s2 = inlined_call_operand.vmem [shape: f32[8,1], index: 2, kind: input, shape index: {}]
  %s3 = inlined_call_operand.hbm [shape: f32[1,128], index: 3, kind: output, shape index: {}]
  %s4 = sld [smem:[#allocation0]]
  $region26: #{tpu_custom_call.1} parent=0
    _
  %s6 = ssub.s32 1, %s4
  %s7 = scalar_select 0, %s6, %s4
  $region1: #{tpu_custom_call.1} parent=0
    #allocation2 [shape = 'u8[4096]{0}', space=vmem, size = 0x1000, scoped, tag = 'input window, operand 1, single buffered']
    #allocation3 [shape = 's32[1]{0}', space=sflag, size = 0x4, scoped, tag = 'scoped memory for tpu_custom_call.1']
    #allocation4 [shape = 's32[1]{0}', space=sflag, size = 0x4, scoped, tag = 'scoped memory for tpu_custom_call.1']
    #allocation5 [shape = 'u8[512]{0}', space=vmem, size = 0x400, scoped, tag = 'output window, operand 0, single buffered']
    %8 = vsyncpa [#allocation3], 0
    %9 = vsyncpa [#allocation4], 0
    // Predicated region
    $region2: #{tpu_custom_call.1} parent=1 // pred_check
      _
    $region3: #{tpu_custom_call.1} parent=1 // pred_check_branch
      %11 = sbr.rel (0) target = $region5
    $region4: #{tpu_custom_call.1} parent=1 // pred_region
      _
    $region5: #{tpu_custom_call.1} parent=1 // pred_fallthru
      _
    // Predicated region
    $region6: #{tpu_custom_call.1} parent=1 // pred_check
      _
    $region7: #{tpu_custom_call.1} parent=1 // pred_check_branch
      %13 = sbr.rel (0) target = $region9
    $region8: #{tpu_custom_call.1} parent=1 // pred_region
      %s15 = ssub.s32 128, 128
      %16 = vsyncadd [#allocation3], %s15
      %s18 = sshll.u32 [#allocation2], 4
      %s19 = int_to_ptr.vmem [resolvable:$true] %s18
      %21 = dma.hbm_to_vmem [thread:$0]  %s1, 128, %s19, [#allocation3]
    $region9: #{tpu_custom_call.1} parent=1 // pred_fallthru
      _
    // Predicated region
    $region10: #{tpu_custom_call.1} parent=1 // pred_check
      _
    $region11: #{tpu_custom_call.1} parent=1 // pred_check_branch
      %23 = sbr.rel (0) target = $region13
    $region12: #{tpu_custom_call.1} parent=1 // pred_region
      _
    $region13: #{tpu_custom_call.1} parent=1 // pred_fallthru
      _
    // Predicated region
    $region14: #{tpu_custom_call.1} parent=1 // pred_check
      _
    $region15: #{tpu_custom_call.1} parent=1 // pred_check_branch
      %25 = sbr.rel (0) target = $region17
    $region16: #{tpu_custom_call.1} parent=1 // pred_region
      %26 = dma.done [#allocation3], 128
    $region17: #{tpu_custom_call.1} parent=1 // pred_fallthru
      _
    %v27 = vld [vmem:[%s0] sm:$0xff]
    %v28 = vld [vmem:[#allocation2] sm:$0xff]
    %v29 = vsub.f32 %v27, %v28
    %v30 = vadd.f32 %v29, 1e-06
    %v31 = vmul.f32 %v30, %v30
    %vm32 = vcmask 261120
    %v33 = vsel %vm32, %v31, 0.0
    %34 = vadd.xlane.f32.xlu0 %v33
    %v35 = vpop.xlane.xlu0 %34
    %v36 = vrsqrt.pop %v35
    %v37 = vmul.f32 %v35, %v36
    %vm38 = vcmp.eq.f32.partialorder %v35, inf
    %v39 = vsel %vm38, %v35, %v37
    %vm40 = vcmp.eq.f32.partialorder %v35, 0.0
    %v41 = vand.u32 %v35, 2147483648
    %v42 = vsel %vm40, %v41, %v39
    %v43 = vld [vmem:[%s2] sm:$0xff]
    %v44 = vsub.f32 1.0, %v42
    %v45 = vmax.f32 %v44, 0.0
    %v46 = vsub.f32 1.0, %v43
    %v47 = vmul.f32 %v46, %v35
    %v48 = vmul.f32 %v45, %v45
    %v49 = vmul.f32 %v43, %v48
    %v50 = vadd.f32 %v47, %v49
    %s51 = smul.u32 0, 8
    %v52 = vlaneseq
    %v53 = vshrl.u32 %v52, 7
    %v54 = vstv %s51
    %v55 = vadd.s32 %v54, %v53
    %vm56 = vcmp.lt.s32.totalorder %v55, 8
    %v57 = vsel %vm56, %v50, 0.0
    %vm58 = vcmask 7168
    %v59 = vsel %vm58, %v57, 0.0
    %60 = vadd.xlane.f32.xlu0 %v59
    %v61 = vpop.xlane.xlu0 %60
    %v62 = vrot.slane %v61, 4
    %v63 = vadd.f32 %v61, %v62
    %v64 = vrot.slane %v63, 2
    %v65 = vadd.f32 %v63, %v64
    %v66 = vrot.slane %v65, 1
    %v67 = vadd.f32 %v65, %v66
    %s68 = vtos %v67
    %v69 = vstv %s68
    %70 = vst [vmem:[#allocation5] sm:$0x1] %v69
    // Predicated region
    $region18: #{tpu_custom_call.1} parent=1 // pred_check
      _
    $region19: #{tpu_custom_call.1} parent=1 // pred_check_branch
      %72 = sbr.rel (0) target = $region21
    $region20: #{tpu_custom_call.1} parent=1 // pred_region
      %s74 = ssub.s32 16, 16
      %75 = vsyncadd [#allocation4], %s74
      %s77 = sshll.u32 [#allocation5], 4
      %s78 = int_to_ptr.vmem [resolvable:$true] %s77
      %80 = dma.vmem_to_hbm [thread:$0]  %s78, 16, %s3, [#allocation4]
    $region21: #{tpu_custom_call.1} parent=1 // pred_fallthru
      _
    // Predicated region
    $region22: #{tpu_custom_call.1} parent=1 // pred_check
      _
    $region23: #{tpu_custom_call.1} parent=1 // pred_check_branch
      %82 = sbr.rel (0) target = $region25
    $region24: #{tpu_custom_call.1} parent=1 // pred_region
      %83 = dma.done [#allocation4], 16
    $region25: #{tpu_custom_call.1} parent=1 // pred_fallthru
      _
    %84 = vsyncpa [#allocation3], 1
    %85 = vsyncpa [#allocation4], 1

</llo_original>
